<compile_context>
chip_gen: v5e
topology: v5e:2x2
jax: 0.10.0
libtpu: 0.0.40
codegen_flags: <defaults>
</compile_context>

<pallas_src>
import functools

import jax
import jax.numpy as jnp
from jax.experimental import pallas as pl
from jax.experimental.pallas import tpu as pltpu


def attention2d_kernel(x_ref, gamma_ref, beta_ref, wqkv_ref, wo_ref, o_ref, *,
                       n_heads, dim_head, eps):
    # x_ref: (N, D) block for the current batch element (leading batch dim squeezed away)
    x = x_ref[...].astype(jnp.float32)                          # (N, D)
    N, D = x.shape

    # ---- LayerNorm over last dim (PyTorch: biased variance, eps=1e-5), f32 math ----
    mean = jnp.mean(x, axis=-1, keepdims=True)
    xc = x - mean
    var = jnp.mean(xc * xc, axis=-1, keepdims=True)
    x_n = xc * jax.lax.rsqrt(var + eps)
    x_n = x_n * gamma_ref[...].astype(jnp.float32) + beta_ref[...].astype(jnp.float32)

    # ---- fused Q/K/V projection: single lane-dense bf16 matmul, f32 accumulation ----
    qkv = jnp.dot(x_n.astype(jnp.bfloat16), wqkv_ref[...],
                  preferred_element_type=jnp.float32)           # (N, 3D) f32

    scale = 1.0 / (dim_head ** 0.5)
    q_all = (qkv[:, 0 * D:1 * D] * scale).astype(jnp.bfloat16)  # scale folded into q once
    k_all = qkv[:, 1 * D:2 * D].astype(jnp.bfloat16)
    v_all = qkv[:, 2 * D:3 * D].astype(jnp.bfloat16)

    wo = wo_ref[...]                                            # (D, D) bf16

    # ---- per-head attention on lane slices (no head transposes), per-head Wo accumulation ----
    acc = jnp.zeros((N, D), jnp.float32)
    for h in range(n_heads):
        lo = h * dim_head
        hi = lo + dim_head
        q_h = q_all[:, lo:hi]                                   # (N, dh) bf16
        k_h = k_all[:, lo:hi]                                   # (N, dh) bf16
        v_h = v_all[:, lo:hi]                                   # (N, dh) bf16

        # scores = q_h @ k_h^T  (contract last dims of both operands; no transpose op)
        s = jax.lax.dot_general(q_h, k_h, (((1,), (1,)), ((), ())),
                                preferred_element_type=jnp.float32)   # (N, N) f32

        # softmax in f32; divide replaced by EUP reciprocal
        s = s - jnp.max(s, axis=-1, keepdims=True)
        p = jnp.exp(s)
        p = p * pl.reciprocal(jnp.sum(p, axis=-1, keepdims=True), approx=True)

        o_h = jnp.dot(p.astype(jnp.bfloat16), v_h,
                      preferred_element_type=jnp.float32)       # (N, dh) f32

        # output projection contribution of this head:  o_h @ Wo^T[lo:hi, :]
        acc = acc + jnp.dot(o_h.astype(jnp.bfloat16), wo[lo:hi, :],
                            preferred_element_type=jnp.float32)  # (N, D) f32

    o_ref[...] = acc.astype(o_ref.dtype)


def attention2d(x, gamma, beta, wq_t, wk_t, wv_t, wo_t, *, n_heads):
    """x: (B, N, D); gamma/beta: (D,); w*_t: (D_in, D_out) transposed PyTorch Linear weights."""
    B, N, D = x.shape
    dim_head = D // n_heads

    # Fuse Q/K/V weights into one (D, 3D) slab and cast weights to bf16 (halves weight DMA).
    # In a real model these would be pre-packed once, outside the hot path.
    wqkv = jnp.concatenate([wq_t, wk_t, wv_t], axis=1).astype(jnp.bfloat16)   # (D, 3D)
    wo = wo_t.astype(jnp.bfloat16)                                            # (D, D)
    gamma2 = gamma.reshape(1, D).astype(jnp.float32)
    beta2 = beta.reshape(1, D).astype(jnp.float32)

    kernel = functools.partial(attention2d_kernel, n_heads=n_heads,
                               dim_head=dim_head, eps=1e-5)

    return pl.pallas_call(
        kernel,
        out_shape=jax.ShapeDtypeStruct((B, N, D), x.dtype),
        grid_spec=pltpu.PrefetchScalarGridSpec(
            num_scalar_prefetch=0,
            grid=(B,),
            in_specs=[
                pl.BlockSpec((pl.Squeezed(), N, D), lambda b: (b, 0, 0)),  # x        -> (N, D)
                pl.BlockSpec((1, D), lambda b: (0, 0)),                    # gamma
                pl.BlockSpec((1, D), lambda b: (0, 0)),                    # beta
                pl.BlockSpec((D, 3 * D), lambda b: (0, 0)),                # fused Wqkv^T (bf16)
                pl.BlockSpec((D, D), lambda b: (0, 0)),                    # Wo^T (bf16)
            ],
            out_specs=pl.BlockSpec((pl.Squeezed(), N, D), lambda b: (b, 0, 0)),
        ),
        compiler_params=pltpu.CompilerParams(
            dimension_semantics=("parallel",),
            vmem_limit_bytes=32 * 1024 * 1024,
        ),
    )(x, gamma2, beta2, wqkv, wo)


def attention2d_ref(x, gamma, beta, wq_t, wk_t, wv_t, wo_t, *, n_heads):
    """Pure-JAX f32 reference mirroring the PyTorch forward (dropout=0)."""
    B, N, D = x.shape
    dh = D // n_heads
    mean = jnp.mean(x, axis=-1, keepdims=True)
    var = jnp.mean((x - mean) ** 2, axis=-1, keepdims=True)
    xn = (x - mean) / jnp.sqrt(var + 1e-5) * gamma + beta
    q = xn @ wq_t
    k = xn @ wk_t
    v = xn @ wv_t

    def split(t):
        return t.reshape(B, N, n_heads, dh).transpose(0, 2, 1, 3)

    q, k, v = split(q), split(k), split(v)
    att = jnp.einsum('bhik,bhjk->bhij', q, k) / (dh ** 0.5)
    att = jax.nn.softmax(att, axis=-1)
    out = jnp.einsum('bhij,bhjk->bhik', att, v)
    out = out.transpose(0, 2, 1, 3).reshape(B, N, D)
    return out @ wo_t


if __name__ == "__main__":
    # Small shapes consistent with the module: dim=32, n_heads=4 -> dim_head=8
    B, N, D, H = 2, 8, 32, 4

    key = jax.random.PRNGKey(0)
    kx, kq, kk, kv, ko = jax.random.split(key, 5)

    x = jax.random.normal(kx, (B, N, D), dtype=jnp.float32)

    # Deterministic parameter init (PyTorch Linear weight shape is (out, in); we
    # store the transposed (in, out) version directly).
    scale = 1.0 / (D ** 0.5)
    wq_t = jax.random.uniform(kq, (D, D), jnp.float32, -scale, scale)
    wk_t = jax.random.uniform(kk, (D, D), jnp.float32, -scale, scale)
    wv_t = jax.random.uniform(kv, (D, D), jnp.float32, -scale, scale)
    wo_t = jax.random.uniform(ko, (D, D), jnp.float32, -scale, scale)
    gamma = jnp.ones((D,), jnp.float32)   # LayerNorm weight init
    beta = jnp.zeros((D,), jnp.float32)   # LayerNorm bias init

    out = attention2d(x, gamma, beta, wq_t, wk_t, wv_t, wo_t, n_heads=H)
    out = jax.block_until_ready(out)

    ref = attention2d_ref(x, gamma, beta, wq_t, wk_t, wv_t, wo_t, n_heads=H)
    assert out.shape == (B, N, D)
    # bf16 MXU operands + approx reciprocal -> tolerance looser than a pure-f32 path.
    assert jnp.allclose(out, ref, atol=3e-2, rtol=3e-2), "mismatch vs reference"

    print("KERNEL_OK")
</pallas_src>

<mosaic_0001>
module attributes {stable_mosaic.version = 11 : i64} {
  func.func @attention2d_kernel(%arg0: i32, %arg1: memref<1x8x32xf32, #tpu.memory_space<vmem>>, %arg2: memref<1x32xf32, #tpu.memory_space<vmem>>, %arg3: memref<1x32xf32, #tpu.memory_space<vmem>>, %arg4: memref<32x96xbf16, #tpu.memory_space<vmem>>, %arg5: memref<32x32xbf16, #tpu.memory_space<vmem>>, %arg6: memref<1x8x32xf32, #tpu.memory_space<vmem>>) attributes {dimension_semantics = [#tpu.dimension_semantics<parallel>], iteration_bounds = array<i64: 2>, scalar_prefetch = 0 : i64, scratch_operands = 0 : i64, tpu.core_type = #tpu.core_type<tc>, window_params = [{transform_indices = @transform_0, window_bounds = array<i64: 1, 8, 32>}, {pipeline_mode = #tpu.pipeline_mode<synchronous>, transform_indices = @transform_1, window_bounds = array<i64: 1, 32>}, {pipeline_mode = #tpu.pipeline_mode<synchronous>, transform_indices = @transform_2, window_bounds = array<i64: 1, 32>}, {pipeline_mode = #tpu.pipeline_mode<synchronous>, transform_indices = @transform_3, window_bounds = array<i64: 32, 96>}, {pipeline_mode = #tpu.pipeline_mode<synchronous>, transform_indices = @transform_4, window_bounds = array<i64: 32, 32>}, {transform_indices = @transform_5, window_bounds = array<i64: 1, 8, 32>}]} {
    %c0 = arith.constant 0 : index
    %c0_0 = arith.constant 0 : index
    %c0_1 = arith.constant 0 : index
    %0 = vector.load %arg1[%c0, %c0_0, %c0_1] : memref<1x8x32xf32, #tpu.memory_space<vmem>>, vector<1x8x32xf32>
    %1 = vector.shape_cast %0 : vector<1x8x32xf32> to vector<8x32xf32>
    %cst = arith.constant dense<0.000000e+00> : vector<8xf32>
    %2 = vector.multi_reduction <add>, %1, %cst [1] : vector<8x32xf32> to vector<8xf32>
    %3 = vector.shape_cast %2 : vector<8xf32> to vector<8x1xf32>
    %cst_2 = arith.constant 3.200000e+01 : f32
    %4 = vector.broadcast %cst_2 : f32 to vector<8x1xf32>
    %5 = arith.divf %3, %4 : vector<8x1xf32>
    %6 = vector.broadcast %5 : vector<8x1xf32> to vector<8x32xf32>
    %7 = arith.subf %1, %6 : vector<8x32xf32>
    %8 = arith.mulf %7, %7 : vector<8x32xf32>
    %cst_3 = arith.constant dense<0.000000e+00> : vector<8xf32>
    %9 = vector.multi_reduction <add>, %8, %cst_3 [1] : vector<8x32xf32> to vector<8xf32>
    %10 = vector.shape_cast %9 : vector<8xf32> to vector<8x1xf32>
    %cst_4 = arith.constant 3.200000e+01 : f32
    %11 = vector.broadcast %cst_4 : f32 to vector<8x1xf32>
    %12 = arith.divf %10, %11 : vector<8x1xf32>
    %cst_5 = arith.constant 9.99999974E-6 : f32
    %13 = vector.broadcast %cst_5 : f32 to vector<8x1xf32>
    %14 = arith.addf %12, %13 : vector<8x1xf32>
    %15 = math.rsqrt %14 : vector<8x1xf32>
    %16 = vector.broadcast %15 : vector<8x1xf32> to vector<8x32xf32>
    %17 = arith.mulf %7, %16 : vector<8x32xf32>
    %c0_6 = arith.constant 0 : index
    %c0_7 = arith.constant 0 : index
    %18 = vector.load %arg2[%c0_6, %c0_7] : memref<1x32xf32, #tpu.memory_space<vmem>>, vector<1x32xf32>
    %19 = vector.broadcast %18 : vector<1x32xf32> to vector<8x32xf32>
    %20 = arith.mulf %17, %19 : vector<8x32xf32>
    %c0_8 = arith.constant 0 : index
    %c0_9 = arith.constant 0 : index
    %21 = vector.load %arg3[%c0_8, %c0_9] : memref<1x32xf32, #tpu.memory_space<vmem>>, vector<1x32xf32>
    %22 = vector.broadcast %21 : vector<1x32xf32> to vector<8x32xf32>
    %23 = arith.addf %20, %22 : vector<8x32xf32>
    %24 = arith.truncf %23 : vector<8x32xf32> to vector<8x32xbf16>
    %c0_10 = arith.constant 0 : index
    %c0_11 = arith.constant 0 : index
    %25 = vector.load %arg4[%c0_10, %c0_11] : memref<32x96xbf16, #tpu.memory_space<vmem>>, vector<32x96xbf16>
    %cst_12 = arith.constant dense<0.000000e+00> : vector<8x96xf32>
    %26 = tpu.matmul %24, %25, %cst_12 {dimension_numbers = #tpu.dot_dimension_numbers<[1], [0], [0], [1], [0, 0, 1, 1], [], []>} : vector<8x32xbf16>, vector<32x96xbf16>, vector<8x96xf32> -> vector<8x96xf32>
    %27 = vector.extract_strided_slice %26 {offsets = [0, 0], sizes = [8, 32], strides = [1, 1]} : vector<8x96xf32> to vector<8x32xf32>
    %cst_13 = arith.constant 0.353553385 : f32
    %28 = vector.broadcast %cst_13 : f32 to vector<8x32xf32>
    %29 = arith.mulf %27, %28 : vector<8x32xf32>
    %30 = arith.truncf %29 : vector<8x32xf32> to vector<8x32xbf16>
    %31 = vector.extract_strided_slice %26 {offsets = [0, 32], sizes = [8, 32], strides = [1, 1]} : vector<8x96xf32> to vector<8x32xf32>
    %32 = arith.truncf %31 : vector<8x32xf32> to vector<8x32xbf16>
    %33 = vector.extract_strided_slice %26 {offsets = [0, 64], sizes = [8, 32], strides = [1, 1]} : vector<8x96xf32> to vector<8x32xf32>
    %34 = arith.truncf %33 : vector<8x32xf32> to vector<8x32xbf16>
    %c0_14 = arith.constant 0 : index
    %c0_15 = arith.constant 0 : index
    %35 = vector.load %arg5[%c0_14, %c0_15] : memref<32x32xbf16, #tpu.memory_space<vmem>>, vector<32x32xbf16>
    %cst_16 = arith.constant 0.000000e+00 : f32
    %36 = vector.broadcast %cst_16 : f32 to vector<8x32xf32>
    %37 = vector.extract_strided_slice %30 {offsets = [0, 0], sizes = [8, 8], strides = [1, 1]} : vector<8x32xbf16> to vector<8x8xbf16>
    %38 = vector.extract_strided_slice %32 {offsets = [0, 0], sizes = [8, 8], strides = [1, 1]} : vector<8x32xbf16> to vector<8x8xbf16>
    %39 = vector.extract_strided_slice %34 {offsets = [0, 0], sizes = [8, 8], strides = [1, 1]} : vector<8x32xbf16> to vector<8x8xbf16>
    %cst_17 = arith.constant dense<0.000000e+00> : vector<8x8xf32>
    %40 = tpu.matmul %37, %38, %cst_17 {dimension_numbers = #tpu.dot_dimension_numbers<[1], [1], [0], [0], [0, 0, 1, 0], [], []>} : vector<8x8xbf16>, vector<8x8xbf16>, vector<8x8xf32> -> vector<8x8xf32>
    %cst_18 = arith.constant dense<0xFF800000> : vector<8xf32>
    %41 = vector.multi_reduction <maximumf>, %40, %cst_18 [1] : vector<8x8xf32> to vector<8xf32>
    %42 = vector.shape_cast %41 : vector<8xf32> to vector<8x1xf32>
    %43 = vector.broadcast %42 : vector<8x1xf32> to vector<8x8xf32>
    %44 = arith.subf %40, %43 : vector<8x8xf32>
    %45 = math.exp %44 : vector<8x8xf32>
    %cst_19 = arith.constant dense<0.000000e+00> : vector<8xf32>
    %46 = vector.multi_reduction <add>, %45, %cst_19 [1] : vector<8x8xf32> to vector<8xf32>
    %47 = vector.shape_cast %46 : vector<8xf32> to vector<8x1xf32>
    %48 = tpu.reciprocal %47 {approx = true} : vector<8x1xf32> -> vector<8x1xf32>
    %49 = vector.broadcast %48 : vector<8x1xf32> to vector<8x8xf32>
    %50 = arith.mulf %45, %49 : vector<8x8xf32>
    %51 = arith.truncf %50 : vector<8x8xf32> to vector<8x8xbf16>
    %cst_20 = arith.constant dense<0.000000e+00> : vector<8x8xf32>
    %52 = tpu.matmul %51, %39, %cst_20 {dimension_numbers = #tpu.dot_dimension_numbers<[1], [0], [0], [1], [0, 0, 1, 1], [], []>} : vector<8x8xbf16>, vector<8x8xbf16>, vector<8x8xf32> -> vector<8x8xf32>
    %53 = arith.truncf %52 : vector<8x8xf32> to vector<8x8xbf16>
    %54 = vector.extract_strided_slice %35 {offsets = [0, 0], sizes = [8, 32], strides = [1, 1]} : vector<32x32xbf16> to vector<8x32xbf16>
    %cst_21 = arith.constant dense<0.000000e+00> : vector<8x32xf32>
    %55 = tpu.matmul %53, %54, %cst_21 {dimension_numbers = #tpu.dot_dimension_numbers<[1], [0], [0], [1], [0, 0, 1, 1], [], []>} : vector<8x8xbf16>, vector<8x32xbf16>, vector<8x32xf32> -> vector<8x32xf32>
    %56 = arith.addf %36, %55 : vector<8x32xf32>
    %57 = vector.extract_strided_slice %30 {offsets = [0, 8], sizes = [8, 8], strides = [1, 1]} : vector<8x32xbf16> to vector<8x8xbf16>
    %58 = vector.extract_strided_slice %32 {offsets = [0, 8], sizes = [8, 8], strides = [1, 1]} : vector<8x32xbf16> to vector<8x8xbf16>
    %59 = vector.extract_strided_slice %34 {offsets = [0, 8], sizes = [8, 8], strides = [1, 1]} : vector<8x32xbf16> to vector<8x8xbf16>
    %cst_22 = arith.constant dense<0.000000e+00> : vector<8x8xf32>
    %60 = tpu.matmul %57, %58, %cst_22 {dimension_numbers = #tpu.dot_dimension_numbers<[1], [1], [0], [0], [0, 0, 1, 0], [], []>} : vector<8x8xbf16>, vector<8x8xbf16>, vector<8x8xf32> -> vector<8x8xf32>
    %cst_23 = arith.constant dense<0xFF800000> : vector<8xf32>
    %61 = vector.multi_reduction <maximumf>, %60, %cst_23 [1] : vector<8x8xf32> to vector<8xf32>
    %62 = vector.shape_cast %61 : vector<8xf32> to vector<8x1xf32>
    %63 = vector.broadcast %62 : vector<8x1xf32> to vector<8x8xf32>
    %64 = arith.subf %60, %63 : vector<8x8xf32>
    %65 = math.exp %64 : vector<8x8xf32>
    %cst_24 = arith.constant dense<0.000000e+00> : vector<8xf32>
    %66 = vector.multi_reduction <add>, %65, %cst_24 [1] : vector<8x8xf32> to vector<8xf32>
    %67 = vector.shape_cast %66 : vector<8xf32> to vector<8x1xf32>
    %68 = tpu.reciprocal %67 {approx = true} : vector<8x1xf32> -> vector<8x1xf32>
    %69 = vector.broadcast %68 : vector<8x1xf32> to vector<8x8xf32>
    %70 = arith.mulf %65, %69 : vector<8x8xf32>
    %71 = arith.truncf %70 : vector<8x8xf32> to vector<8x8xbf16>
    %cst_25 = arith.constant dense<0.000000e+00> : vector<8x8xf32>
    %72 = tpu.matmul %71, %59, %cst_25 {dimension_numbers = #tpu.dot_dimension_numbers<[1], [0], [0], [1], [0, 0, 1, 1], [], []>} : vector<8x8xbf16>, vector<8x8xbf16>, vector<8x8xf32> -> vector<8x8xf32>
    %73 = arith.truncf %72 : vector<8x8xf32> to vector<8x8xbf16>
    %74 = vector.extract_strided_slice %35 {offsets = [8, 0], sizes = [8, 32], strides = [1, 1]} : vector<32x32xbf16> to vector<8x32xbf16>
    %cst_26 = arith.constant dense<0.000000e+00> : vector<8x32xf32>
    %75 = tpu.matmul %73, %74, %cst_26 {dimension_numbers = #tpu.dot_dimension_numbers<[1], [0], [0], [1], [0, 0, 1, 1], [], []>} : vector<8x8xbf16>, vector<8x32xbf16>, vector<8x32xf32> -> vector<8x32xf32>
    %76 = arith.addf %56, %75 : vector<8x32xf32>
    %77 = vector.extract_strided_slice %30 {offsets = [0, 16], sizes = [8, 8], strides = [1, 1]} : vector<8x32xbf16> to vector<8x8xbf16>
    %78 = vector.extract_strided_slice %32 {offsets = [0, 16], sizes = [8, 8], strides = [1, 1]} : vector<8x32xbf16> to vector<8x8xbf16>
    %79 = vector.extract_strided_slice %34 {offsets = [0, 16], sizes = [8, 8], strides = [1, 1]} : vector<8x32xbf16> to vector<8x8xbf16>
    %cst_27 = arith.constant dense<0.000000e+00> : vector<8x8xf32>
    %80 = tpu.matmul %77, %78, %cst_27 {dimension_numbers = #tpu.dot_dimension_numbers<[1], [1], [0], [0], [0, 0, 1, 0], [], []>} : vector<8x8xbf16>, vector<8x8xbf16>, vector<8x8xf32> -> vector<8x8xf32>
    %cst_28 = arith.constant dense<0xFF800000> : vector<8xf32>
    %81 = vector.multi_reduction <maximumf>, %80, %cst_28 [1] : vector<8x8xf32> to vector<8xf32>
    %82 = vector.shape_cast %81 : vector<8xf32> to vector<8x1xf32>
    %83 = vector.broadcast %82 : vector<8x1xf32> to vector<8x8xf32>
    %84 = arith.subf %80, %83 : vector<8x8xf32>
    %85 = math.exp %84 : vector<8x8xf32>
    %cst_29 = arith.constant dense<0.000000e+00> : vector<8xf32>
    %86 = vector.multi_reduction <add>, %85, %cst_29 [1] : vector<8x8xf32> to vector<8xf32>
    %87 = vector.shape_cast %86 : vector<8xf32> to vector<8x1xf32>
    %88 = tpu.reciprocal %87 {approx = true} : vector<8x1xf32> -> vector<8x1xf32>
    %89 = vector.broadcast %88 : vector<8x1xf32> to vector<8x8xf32>
    %90 = arith.mulf %85, %89 : vector<8x8xf32>
    %91 = arith.truncf %90 : vector<8x8xf32> to vector<8x8xbf16>
    %cst_30 = arith.constant dense<0.000000e+00> : vector<8x8xf32>
    %92 = tpu.matmul %91, %79, %cst_30 {dimension_numbers = #tpu.dot_dimension_numbers<[1], [0], [0], [1], [0, 0, 1, 1], [], []>} : vector<8x8xbf16>, vector<8x8xbf16>, vector<8x8xf32> -> vector<8x8xf32>
    %93 = arith.truncf %92 : vector<8x8xf32> to vector<8x8xbf16>
    %94 = vector.extract_strided_slice %35 {offsets = [16, 0], sizes = [8, 32], strides = [1, 1]} : vector<32x32xbf16> to vector<8x32xbf16>
    %cst_31 = arith.constant dense<0.000000e+00> : vector<8x32xf32>
    %95 = tpu.matmul %93, %94, %cst_31 {dimension_numbers = #tpu.dot_dimension_numbers<[1], [0], [0], [1], [0, 0, 1, 1], [], []>} : vector<8x8xbf16>, vector<8x32xbf16>, vector<8x32xf32> -> vector<8x32xf32>
    %96 = arith.addf %76, %95 : vector<8x32xf32>
    %97 = vector.extract_strided_slice %30 {offsets = [0, 24], sizes = [8, 8], strides = [1, 1]} : vector<8x32xbf16> to vector<8x8xbf16>
    %98 = vector.extract_strided_slice %32 {offsets = [0, 24], sizes = [8, 8], strides = [1, 1]} : vector<8x32xbf16> to vector<8x8xbf16>
    %99 = vector.extract_strided_slice %34 {offsets = [0, 24], sizes = [8, 8], strides = [1, 1]} : vector<8x32xbf16> to vector<8x8xbf16>
    %cst_32 = arith.constant dense<0.000000e+00> : vector<8x8xf32>
    %100 = tpu.matmul %97, %98, %cst_32 {dimension_numbers = #tpu.dot_dimension_numbers<[1], [1], [0], [0], [0, 0, 1, 0], [], []>} : vector<8x8xbf16>, vector<8x8xbf16>, vector<8x8xf32> -> vector<8x8xf32>
    %cst_33 = arith.constant dense<0xFF800000> : vector<8xf32>
    %101 = vector.multi_reduction <maximumf>, %100, %cst_33 [1] : vector<8x8xf32> to vector<8xf32>
    %102 = vector.shape_cast %101 : vector<8xf32> to vector<8x1xf32>
    %103 = vector.broadcast %102 : vector<8x1xf32> to vector<8x8xf32>
    %104 = arith.subf %100, %103 : vector<8x8xf32>
    %105 = math.exp %104 : vector<8x8xf32>
    %cst_34 = arith.constant dense<0.000000e+00> : vector<8xf32>
    %106 = vector.multi_reduction <add>, %105, %cst_34 [1] : vector<8x8xf32> to vector<8xf32>
    %107 = vector.shape_cast %106 : vector<8xf32> to vector<8x1xf32>
    %108 = tpu.reciprocal %107 {approx = true} : vector<8x1xf32> -> vector<8x1xf32>
    %109 = vector.broadcast %108 : vector<8x1xf32> to vector<8x8xf32>
    %110 = arith.mulf %105, %109 : vector<8x8xf32>
    %111 = arith.truncf %110 : vector<8x8xf32> to vector<8x8xbf16>
    %cst_35 = arith.constant dense<0.000000e+00> : vector<8x8xf32>
    %112 = tpu.matmul %111, %99, %cst_35 {dimension_numbers = #tpu.dot_dimension_numbers<[1], [0], [0], [1], [0, 0, 1, 1], [], []>} : vector<8x8xbf16>, vector<8x8xbf16>, vector<8x8xf32> -> vector<8x8xf32>
    %113 = arith.truncf %112 : vector<8x8xf32> to vector<8x8xbf16>
    %114 = vector.extract_strided_slice %35 {offsets = [24, 0], sizes = [8, 32], strides = [1, 1]} : vector<32x32xbf16> to vector<8x32xbf16>
    %cst_36 = arith.constant dense<0.000000e+00> : vector<8x32xf32>
    %115 = tpu.matmul %113, %114, %cst_36 {dimension_numbers = #tpu.dot_dimension_numbers<[1], [0], [0], [1], [0, 0, 1, 1], [], []>} : vector<8x8xbf16>, vector<8x32xbf16>, vector<8x32xf32> -> vector<8x32xf32>
    %116 = arith.addf %96, %115 : vector<8x32xf32>
    %c0_37 = arith.constant 0 : index
    %c0_38 = arith.constant 0 : index
    %c0_39 = arith.constant 0 : index
    %117 = vector.load %arg6[%c0_37, %c0_38, %c0_39] : memref<1x8x32xf32, #tpu.memory_space<vmem>>, vector<1x8x32xf32>
    %118 = vector.shape_cast %117 : vector<1x8x32xf32> to vector<8x32xf32>
    %119 = vector.shape_cast %116 : vector<8x32xf32> to vector<1x8x32xf32>
    tpu.vector_store %arg6[%c0_37, %c0_38, %c0_39], %119 {strides = array<i32>} : memref<1x8x32xf32, #tpu.memory_space<vmem>>, vector<1x8x32xf32>,
    return
  }
  func.func @transform_0(%arg0: i32) -> (i32, i32, i32) {
    %c0_i32 = arith.constant 0 : i32
    %c0_i32_0 = arith.constant 0 : i32
    %c0_i32_1 = arith.constant 0 : i32
    return %arg0, %c0_i32, %c0_i32_0 : i32, i32, i32
  }
  func.func @transform_1(%arg0: i32) -> (i32, i32) {
    %c0_i32 = arith.constant 0 : i32
    %c0_i32_0 = arith.constant 0 : i32
    %c0_i32_1 = arith.constant 0 : i32
    return %c0_i32, %c0_i32_0 : i32, i32
  }
  func.func @transform_2(%arg0: i32) -> (i32, i32) {
    %c0_i32 = arith.constant 0 : i32
    %c0_i32_0 = arith.constant 0 : i32
    %c0_i32_1 = arith.constant 0 : i32
    return %c0_i32, %c0_i32_0 : i32, i32
  }
  func.func @transform_3(%arg0: i32) -> (i32, i32) {
    %c0_i32 = arith.constant 0 : i32
    %c0_i32_0 = arith.constant 0 : i32
    %c0_i32_1 = arith.constant 0 : i32
    return %c0_i32, %c0_i32_0 : i32, i32
  }
  func.func @transform_4(%arg0: i32) -> (i32, i32) {
    %c0_i32 = arith.constant 0 : i32
    %c0_i32_0 = arith.constant 0 : i32
    %c0_i32_1 = arith.constant 0 : i32
    return %c0_i32, %c0_i32_0 : i32, i32
  }
  func.func @transform_5(%arg0: i32) -> (i32, i32, i32) {
    %c0_i32 = arith.constant 0 : i32
    %c0_i32_0 = arith.constant 0 : i32
    %c0_i32_1 = arith.constant 0 : i32
    return %arg0, %c0_i32, %c0_i32_0 : i32, i32, i32
  }
}

</mosaic_0001>

<llo_original>
// kernel: tpu_custom_call.1
$region0: #{tpu_custom_call.1}
  #allocation0 [shape = 'u32[]', space=smem, size = 0x4, offset = 0x4, fixed_abs, tag = 'smem constant byte address 0x4 - core index']
  #allocation1 [shape = 'u32[72,128]{1,0:T(1,128)}', space=vmem, size = 0x9000, scoped, tag = 'internal scratch']
  %s0 = inlined_call_operand.hbm [shape: f32[2,8,32], index: 0, kind: input, shape index: {}]
  %s1 = inlined_call_operand.hbm [shape: f32[1,32], index: 1, kind: input, shape index: {}]
  %s2 = inlined_call_operand.vmem [shape: f32[1,32], index: 2, kind: input, shape index: {}]
  %s3 = inlined_call_operand.hbm [shape: bf16[32,96], index: 3, kind: input, shape index: {}]
  %s4 = inlined_call_operand.hbm [shape: bf16[32,32], index: 4, kind: input, shape index: {}]
  %s5 = inlined_call_operand.hbm [shape: f32[2,8,32], index: 5, kind: output, shape index: {}]
  %s6 = sld [smem:[#allocation0]]
  $region69: #{tpu_custom_call.1} parent=0
    _
  %s8 = ssub.s32 1, %s6
  %s9 = scalar_select 0, %s8, %s6
  $region1: #{tpu_custom_call.1} parent=0
    #allocation2 [shape = 'u8[8192]{0}', space=vmem, size = 0x2000, scoped, tag = 'input window, operand 0']
    #allocation3 [shape = 's32[2]{0}', space=sflag, size = 0x8, scoped, tag = 'scoped memory for tpu_custom_call.1']
    #allocation4 [shape = 's32[2]{0}', space=sflag, size = 0x8, scoped, tag = 'scoped memory for tpu_custom_call.1']
    #allocation5 [shape = 'u8[512]{0}', space=vmem, size = 0x400, scoped, tag = 'input window, operand 1, single buffered']
    #allocation6 [shape = 's32[1]{0}', space=sflag, size = 0x4, scoped, tag = 'scoped memory for tpu_custom_call.1']
    #allocation7 [shape = 'u8[8192]{0}', space=vmem, size = 0x2000, scoped, tag = 'input window, operand 3, single buffered']
    #allocation8 [shape = 'u8[8192]{0}', space=vmem, size = 0x2000, scoped, tag = 'input window, operand 4, single buffered']
    #allocation9 [shape = 's32[1]{0}', space=sflag, size = 0x4, scoped, tag = 'scoped memory for tpu_custom_call.1']
    #allocation10 [shape = 'u8[8192]{0}', space=vmem, size = 0x2000, scoped, tag = 'output window, operand 0']
    %10 = vsyncpa [#allocation3], 0
    %s11 = scalar_lea.sflag [#allocation3], 1
    %12 = vsyncpa %s11, 0
    %13 = vsyncpa [#allocation6], 0
    %14 = vsyncpa [#allocation9], 0
    %15 = vsyncpa [#allocation4], 0
    %s16 = scalar_lea.sflag [#allocation4], 1
    %17 = vsyncpa %s16, 0
    loop: start=0, step=1, limit=4
    $region2: #{tpu_custom_call.1} parent=1 // loop_pre_header
      _
    $region3: #{tpu_custom_call.1} parent=1 // loop_header
      %s19 = sphi 0, %s23
      %p20 = scmp.ge.s32.totalorder %s19, 4
      %s29 = sphi 0, %s31
      %s32 = sphi 0, %s29
      %s33 = sphi 0, %s32
      %s49 = sphi 0, %s33
      %s53 = sphi 0, %s53
      %s55 = sphi 0, %s53
      %s56 = sphi 0, %s55
      %s70 = sphi 0, %s56
      %s74 = sphi 0, %s74
      %s76 = sphi 0, %s74
      %s77 = sphi 0, %s76
      %s91 = sphi 0, %s77
      %s95 = sphi 0, %s95
      %s97 = sphi 0, %s95
      %s98 = sphi 0, %s97
      %s112 = sphi 0, %s98
      %s116 = sphi 0, %s116
      %s118 = sphi 0, %s116
      %s119 = sphi 0, %s118
      %s133 = sphi 0, %s119
      %s139 = sphi 0, %s141
      %s142 = sphi 0, %s139
      %s143 = sphi 0, %s142
      %s159 = sphi 0, %s143
    $region4: #{tpu_custom_call.1} parent=1 // loop_header_branch
      %22 = sbr.rel (%p20) target = $region8
    $region5: #{tpu_custom_call.1} parent=1 // loop_body
      %s24 = ssub.s32 %s19, 1
      %s25 = ssub.s32 %s19, 2
      %s26 = sadd.s32 %s19, 1
      %s27 = ssub.s32 %s19, %s26
      %p28 = scmp.eq.s32.totalorder %s27, 0
      %s30 = sadd.s32 %s29, 1
      %s31 = scalar_select %p28, %s29, %s30
      %p34 = pneg %p28
      %p35 = scmp.eq.s32.totalorder %s19, 1
      %p36 = por %p34, %p35
      %p37 = scmp.ne.s32.totalorder %s29, %s32
      %p38 = scmp.eq.s32.totalorder %s19, 0
      %p39 = por %p37, %p38
      %p40 = scmp.ne.s32.totalorder %s29, %s32
      %p41 = scmp.eq.s32.totalorder %s24, 1
      %p42 = por %p40, %p41
      %p43 = scmp.ne.s32.totalorder %s32, %s33
      %p44 = scmp.eq.s32.totalorder %s24, 0
      %p45 = por %p43, %p44
      %p46 = scmp.ne.s32.totalorder %s32, %s33
      %p47 = scmp.eq.s32.totalorder %s25, 1
      %p48 = por %p46, %p47
      %p50 = scmp.ne.s32.totalorder %s33, %s49
      %p51 = scmp.eq.s32.totalorder %s25, 0
      %p52 = por %p50, %p51
      %s54 = sadd.s32 %s53, 1
      %p57 = scmp.eq.s32.totalorder %s19, 1
      %p58 = scmp.ne.s32.totalorder %s53, %s55
      %p59 = scmp.eq.s32.totalorder %s19, 0
      %p60 = por %p58, %p59
      %p61 = scmp.ne.s32.totalorder %s53, %s55
      %p62 = scmp.eq.s32.totalorder %s24, 1
      %p63 = por %p61, %p62
      %p64 = scmp.ne.s32.totalorder %s55, %s56
      %p65 = scmp.eq.s32.totalorder %s24, 0
      %p66 = por %p64, %p65
      %p67 = scmp.ne.s32.totalorder %s55, %s56
      %p68 = scmp.eq.s32.totalorder %s25, 1
      %p69 = por %p67, %p68
      %p71 = scmp.ne.s32.totalorder %s56, %s70
      %p72 = scmp.eq.s32.totalorder %s25, 0
      %p73 = por %p71, %p72
      %s75 = sadd.s32 %s74, 1
      %p78 = scmp.eq.s32.totalorder %s19, 1
      %p79 = scmp.ne.s32.totalorder %s74, %s76
      %p80 = scmp.eq.s32.totalorder %s19, 0
      %p81 = por %p79, %p80
      %p82 = scmp.ne.s32.totalorder %s74, %s76
      %p83 = scmp.eq.s32.totalorder %s24, 1
      %p84 = por %p82, %p83
      %p85 = scmp.ne.s32.totalorder %s76, %s77
      %p86 = scmp.eq.s32.totalorder %s24, 0
      %p87 = por %p85, %p86
      %p88 = scmp.ne.s32.totalorder %s76, %s77
      %p89 = scmp.eq.s32.totalorder %s25, 1
      %p90 = por %p88, %p89
      %p92 = scmp.ne.s32.totalorder %s77, %s91
      %p93 = scmp.eq.s32.totalorder %s25, 0
      %p94 = por %p92, %p93
      %s96 = sadd.s32 %s95, 1
      %p99 = scmp.eq.s32.totalorder %s19, 1
      %p100 = scmp.ne.s32.totalorder %s95, %s97
      %p101 = scmp.eq.s32.totalorder %s19, 0
      %p102 = por %p100, %p101
      %p103 = scmp.ne.s32.totalorder %s95, %s97
      %p104 = scmp.eq.s32.totalorder %s24, 1
      %p105 = por %p103, %p104
      %p106 = scmp.ne.s32.totalorder %s97, %s98
      %p107 = scmp.eq.s32.totalorder %s24, 0
      %p108 = por %p106, %p107
      %p109 = scmp.ne.s32.totalorder %s97, %s98
      %p110 = scmp.eq.s32.totalorder %s25, 1
      %p111 = por %p109, %p110
      %p113 = scmp.ne.s32.totalorder %s98, %s112
      %p114 = scmp.eq.s32.totalorder %s25, 0
      %p115 = por %p113, %p114
      %s117 = sadd.s32 %s116, 1
      %p120 = scmp.eq.s32.totalorder %s19, 1
      %p121 = scmp.ne.s32.totalorder %s116, %s118
      %p122 = scmp.eq.s32.totalorder %s19, 0
      %p123 = por %p121, %p122
      %p124 = scmp.ne.s32.totalorder %s116, %s118
      %p125 = scmp.eq.s32.totalorder %s24, 1
      %p126 = por %p124, %p125
      %p127 = scmp.ne.s32.totalorder %s118, %s119
      %p128 = scmp.eq.s32.totalorder %s24, 0
      %p129 = por %p127, %p128
      %p130 = scmp.ne.s32.totalorder %s118, %s119
      %p131 = scmp.eq.s32.totalorder %s25, 1
      %p132 = por %p130, %p131
      %p134 = scmp.ne.s32.totalorder %s119, %s133
      %p135 = scmp.eq.s32.totalorder %s25, 0
      %p136 = por %p134, %p135
      %s137 = ssub.s32 %s19, %s26
      %p138 = scmp.eq.s32.totalorder %s137, 0
      %s140 = sadd.s32 %s139, 1
      %s141 = scalar_select %p138, %s139, %s140
      %p144 = pneg %p138
      %p145 = scmp.eq.s32.totalorder %s19, 1
      %p146 = por %p144, %p145
      %p147 = scmp.ne.s32.totalorder %s139, %s142
      %p148 = scmp.eq.s32.totalorder %s19, 0
      %p149 = por %p147, %p148
      %p150 = scmp.ne.s32.totalorder %s139, %s142
      %p151 = scmp.eq.s32.totalorder %s24, 1
      %p152 = por %p150, %p151
      %p153 = scmp.ne.s32.totalorder %s142, %s143
      %p154 = scmp.eq.s32.totalorder %s24, 0
      %p155 = por %p153, %p154
      %p156 = scmp.ne.s32.totalorder %s142, %s143
      %p157 = scmp.eq.s32.totalorder %s25, 1
      %p158 = por %p156, %p157
      %p160 = scmp.ne.s32.totalorder %s143, %s159
      %p161 = scmp.eq.s32.totalorder %s25, 0
      %p162 = por %p160, %p161
      %p163 = scmp.le.s32.totalorder 1, %s19
      %p164 = scmp.lt.s32.totalorder %s19, 3
      %p165 = pnand %p163, %p164
      %p166 = pneg %p165
      // Predicated region
      $region9: #{tpu_custom_call.1} parent=5 // pred_check
        _
      $region10: #{tpu_custom_call.1} parent=5 // pred_check_branch
        %168 = sbr.rel (%p165) target = $region12
      $region11: #{tpu_custom_call.1} parent=5 // pred_region
        %s169 = ssub.s32 %s19, 1
        // Predicated region
        $region13: #{tpu_custom_call.1} parent=11 // pred_check
          %p170 = pneg %p66
        $region14: #{tpu_custom_call.1} parent=11 // pred_check_branch
          %172 = sbr.rel (%p170) target = $region16
        $region15: #{tpu_custom_call.1} parent=11 // pred_region
          %174 = vsyncadd [#allocation6], 0
          %s176 = sshll.u32 %s1, 4
          %s177 = int_to_ptr.hbm [resolvable:$true] %s176
          %s178 = sshll.u32 [#allocation5], 4
          %s179 = int_to_ptr.vmem [resolvable:$true] %s178
          %181 = dma.hbm_to_vmem [thread:$0]  %s177, 16, %s179, [#allocation6]
        $region16: #{tpu_custom_call.1} parent=11 // pred_fallthru
          _
        // Predicated region
        $region17: #{tpu_custom_call.1} parent=11 // pred_check
          %p182 = pneg %p87
        $region18: #{tpu_custom_call.1} parent=11 // pred_check_branch
          %184 = sbr.rel (%p182) target = $region20
        $region19: #{tpu_custom_call.1} parent=11 // pred_region
          _
        $region20: #{tpu_custom_call.1} parent=11 // pred_fallthru
          _
        // Predicated region
        $region21: #{tpu_custom_call.1} parent=11 // pred_check
          %p185 = pneg %p108
        $region22: #{tpu_custom_call.1} parent=11 // pred_check_branch
          %187 = sbr.rel (%p185) target = $region24
        $region23: #{tpu_custom_call.1} parent=11 // pred_region
          %189 = vsyncadd [#allocation6], 0
          %s190 = sshll.u32 %s3, 4
          %s191 = int_to_ptr.hbm [resolvable:$true] %s190
          %s192 = sshll.u32 [#allocation7], 4
          %s193 = int_to_ptr.vmem [resolvable:$true] %s192
          %198 = dma.hbm_to_vmem [thread:$0]  %s191, 256, %s193, [#allocation6], 64, 64, 4
        $region24: #{tpu_custom_call.1} parent=11 // pred_fallthru
          _
        // Predicated region
        $region25: #{tpu_custom_call.1} parent=11 // pred_check
          %p199 = pneg %p129
        $region26: #{tpu_custom_call.1} parent=11 // pred_check_branch
          %201 = sbr.rel (%p199) target = $region28
        $region27: #{tpu_custom_call.1} parent=11 // pred_region
          %203 = vsyncadd [#allocation9], 0
          %s204 = sshll.u32 %s4, 4
          %s205 = int_to_ptr.hbm [resolvable:$true] %s204
          %s206 = sshll.u32 [#allocation8], 4
          %s207 = int_to_ptr.vmem [resolvable:$true] %s206
          %212 = dma.hbm_to_vmem [thread:$0]  %s205, 256, %s207, [#allocation9], 64, 64, 4
        $region28: #{tpu_custom_call.1} parent=11 // pred_fallthru
          _
      $region12: #{tpu_custom_call.1} parent=5 // pred_fallthru
        _
      %p213 = scmp.lt.s32.totalorder %s19, 2
      // Predicated region
      $region29: #{tpu_custom_call.1} parent=5 // pred_check
        %p214 = pneg %p213
      $region30: #{tpu_custom_call.1} parent=5 // pred_check_branch
        %216 = sbr.rel (%p214) target = $region32
      $region31: #{tpu_custom_call.1} parent=5 // pred_region
        // Predicated region
        $region33: #{tpu_custom_call.1} parent=31 // pred_check
          %p217 = pneg %p39
        $region34: #{tpu_custom_call.1} parent=31 // pred_check_branch
          %219 = sbr.rel (%p217) target = $region36
        $region35: #{tpu_custom_call.1} parent=31 // pred_region
          %s220 = sand.u32 %s29, 1
          %s221 = scalar_lea.sflag [#allocation3], %s220
          %s222 = sand.u32 %s29, 1
          %s223 = smul.addr %s222, 8
          %s224 = scalar_lea.vmem [#allocation2], %s223
          %226 = vsyncadd %s221, 0
          %s227 = smul.addr %s19, 8
          %s228 = scalar_lea.hbm %s0, %s227
          %s230 = sshll.u32 %s228, 4
          %s231 = int_to_ptr.hbm [resolvable:$true] %s230
          %s232 = sshll.u32 %s224, 4
          %s233 = int_to_ptr.vmem [resolvable:$true] %s232
          %235 = dma.hbm_to_vmem [thread:$0]  %s231, 128, %s233, %s221
        $region36: #{tpu_custom_call.1} parent=31 // pred_fallthru
          _
      $region32: #{tpu_custom_call.1} parent=5 // pred_fallthru
        _
      %p236 = scmp.le.s32.totalorder 1, %s19
      %p237 = scmp.lt.s32.totalorder %s19, 3
      %p238 = pnand %p236, %p237
      %p239 = pneg %p238
      // Predicated region
      $region37: #{tpu_custom_call.1} parent=5 // pred_check
        _
      $region38: #{tpu_custom_call.1} parent=5 // pred_check_branch
        %241 = sbr.rel (%p238) target = $region40
      $region39: #{tpu_custom_call.1} parent=5 // pred_region
        %s242 = ssub.s32 %s19, 1
        %s243 = sand.u32 %s32, 1
        %s244 = scalar_lea.sflag [#allocation3], %s243
        %s245 = sand.u32 %s32, 1
        %s246 = smul.addr %s245, 8
        %s247 = scalar_lea.vmem [#allocation2], %s246
        // Predicated region
        $region41: #{tpu_custom_call.1} parent=39 // pred_check
          %p248 = pneg %p45
        $region42: #{tpu_custom_call.1} parent=39 // pred_check_branch
          %250 = sbr.rel (%p248) target = $region44
        $region43: #{tpu_custom_call.1} parent=39 // pred_region
          %252 = dma.done %s244, 128
        $region44: #{tpu_custom_call.1} parent=39 // pred_fallthru
          _
        // Predicated region
        $region45: #{tpu_custom_call.1} parent=39 // pred_check
          %p253 = pneg %p66
        $region46: #{tpu_custom_call.1} parent=39 // pred_check_branch
          %255 = sbr.rel (%p253) target = $region48
        $region47: #{tpu_custom_call.1} parent=39 // pred_region
          %257 = dma.done [#allocation6], 16
        $region48: #{tpu_custom_call.1} parent=39 // pred_fallthru
          _
        // Predicated region
        $region49: #{tpu_custom_call.1} parent=39 // pred_check
          %p258 = pneg %p108
        $region50: #{tpu_custom_call.1} parent=39 // pred_check_branch
          %260 = sbr.rel (%p258) target = $region52
        $region51: #{tpu_custom_call.1} parent=39 // pred_region
          %262 = dma.done [#allocation6], 256
        $region52: #{tpu_custom_call.1} parent=39 // pred_fallthru
          _
        // Predicated region
        $region53: #{tpu_custom_call.1} parent=39 // pred_check
          %p263 = pneg %p129
        $region54: #{tpu_custom_call.1} parent=39 // pred_check_branch
          %265 = sbr.rel (%p263) target = $region56
        $region55: #{tpu_custom_call.1} parent=39 // pred_region
          %267 = dma.done [#allocation9], 256
        $region56: #{tpu_custom_call.1} parent=39 // pred_fallthru
          _
        %s268 = sand.u32 %s32, 1
        %s269 = scalar_lea.sflag [#allocation3], %s268
        %s270 = sand.u32 %s32, 1
        %s271 = smul.addr %s270, 8
        %s272 = scalar_lea.vmem [#allocation2], %s271
        %p273 = pneg %p45
        %p274 = pneg %p42
        %p275 = pneg %p66
        %p276 = pneg %p63
        %p277 = pneg %p87
        %p278 = pneg %p84
        %p279 = pneg %p108
        %p280 = pneg %p105
        %p281 = pneg %p129
        %p282 = pneg %p126
        %p283 = pneg %p155
        %p284 = pneg %p152
        %s285 = sand.u32 %s142, 1
        %s286 = scalar_lea.sflag [#allocation4], %s285
        %s287 = sand.u32 %s142, 1
        %s288 = smul.addr %s287, 8
        %s289 = scalar_lea.vmem [#allocation10], %s288
        %v291 = vld [vmem:[%s247] sm:$0xff]
        %vm292 = vcmask 261120
        %v293 = vsel %vm292, %v291, 0.0
        %294 = vadd.xlane.f32.xlu0 %v293
        %v295 = vpop.xlane.xlu0 %294
        %v296 = vrcp.pop 32.0
        %v297 = vmul.f32 32.0, %v296
        %v298 = vsub.f32 1.0, %v297
        %v299 = vmul.f32 %v296, %v298
        %v300 = vadd.f32 %v296, %v299
        %vm301 = vweird.f32 %v296
        %v302 = vsel %vm301, %v296, %v300
        %v303 = vmul.f32 %v295, %v302
        %v304 = vsub.f32 %v291, %v303
        %v305 = vmul.f32 %v304, %v304
        %v306 = vsel %vm292, %v305, 0.0
        %307 = vadd.xlane.f32.xlu0 %v306
        %v308 = vpop.xlane.xlu0 %307
        %v309 = vmul.f32 %v308, %v302
        %v310 = vadd.f32 %v309, 1e-05
        %v311 = vrsqrt.pop %v310
        %v312 = vmul.f32 %v311, %v310
        %v313 = vmul.f32 %v312, %v311
        %v314 = vmul.f32 0.5, %v313
        %v315 = vsub.f32 1.5, %v314
        %v316 = vmul.f32 %v311, %v315
        %vm317 = vweird.f32 %v310
        %vm318 = vweird.f32 %v311
        %vm319 = vmor %vm317, %vm318
        %v320 = vsel %vm319, %v311, %v316
        %v321 = vmul.f32 %v304, %v320
        %v322 = vld [vmem:[#allocation5] sm:$0x1]
        %v324 = vperm.slane %v322, 0
        %v326 = vmul.f32 %v321, %v324
        %v327 = vld [vmem:[%s2] sm:$0x1]
        %v329 = vperm.slane %v327, 0
        %v331 = vadd.f32 %v326, %v329
        %v332 = vpack.c.bf16 %v331, %v331
        %v333 = vld [vmem:[#allocation7] sm:$0xf]
        %v334 = vld [vmem:[#allocation7 + $0x4] sm:$0xf]
        %v335 = vld [vmem:[#allocation7 + $0x8] sm:$0xf]
        %v336 = vld [vmem:[#allocation7 + $0xc] sm:$0xf]
        %v341 = vunpack.c.l.b16 %v333
        %v342 = vunpack.c.l.b16 %v334
        %v343 = vunpack.c.l.b16 %v335
        %v344 = vunpack.c.l.b16 %v336
        %v345 = vpack.c.b16 %v342, %v341
        %v346 = vpack.c.b16 %v344, %v343
        %v350 = vsel %vm292, %v332, 0
        %352 = vmatpush.bf16.msra.mxu0 0
        %353 = vmatpush.bf16.msra.mxu0 0
        %354 = vmatpush.bf16.msra.mxu0 0
        %355 = vmatpush.bf16.msra.mxu0 0
        %356 = vmatpush.bf16.msra.mxu0 0
        %357 = vmatpush.bf16.msra.mxu0 0
        %358 = vmatpush.bf16.msra.mxu0 %v346
        %359 = vmatpush.bf16.msra.mxu0 %v345
        %360 = vmatmul.bf16.gmra.mxu0 %v350
        %v361 = vpop.f32.mrf.mxu0
        %v362 = vadd.f32 0.0, %v361
        %v363 = vpop.f32.mrf.mxu0
        %364 = vdwg.mxu0
        %v365 = vmul.f32 %v362, 0.35355338
        %v366 = vpack.c.bf16 %v365, %v365
        %v367 = vpack.c.bf16 %v362, %v362
        %v368 = vld [vmem:[#allocation8] sm:$0xf]
        %v369 = vld [vmem:[#allocation8 + $0x4] sm:$0xf]
        %v370 = vld [vmem:[#allocation8 + $0x8] sm:$0xf]
        %v371 = vld [vmem:[#allocation8 + $0xc] sm:$0xf]
        %v373 = vunpack.c.l.b16 %v367
        %v374 = vpack.c.b16 %v373, %v373
        %375 = vrot.lane.b32.xlu0 %v374, 96
        %v376 = vpop.permute.xlu0 %375
        %vm377 = vcmask 64512
        %v379 = vsel %vm377, %v366, 0
        %v382 = vsel %vm377, %v376, 0
        %384 = vmatpush.bf16.xpose.msra.mxu0 0
        %385 = vmatpush.bf16.xpose.msra.mxu0 0
        %386 = vmatpush.bf16.xpose.msra.mxu0 0
        %387 = vmatpush.bf16.xpose.msra.mxu0 0
        %388 = vmatpush.bf16.xpose.msra.mxu0 0
        %389 = vmatpush.bf16.xpose.msra.mxu0 0
        %390 = vmatpush.bf16.xpose.msra.mxu0 0
        %391 = vmatpush.bf16.xpose.msra.mxu0 %v382
        %392 = vmatmul.bf16.gmra.mxu0 %v379
        %v393 = vpop.f32.mrf.mxu0
        %v394 = vadd.f32 0.0, %v393
        %v395 = vpop.f32.mrf.mxu0
        %396 = vdwg.mxu0
        %v397 = vsel %vm377, %v394, -inf
        %398 = vmax.xlane.f32.xlu0 %v397
        %v399 = vpop.xlane.xlu0 %398
        %v400 = vsub.f32 %v394, %v399
        %v401 = vmul.f32 %v400, 1.442695
        %v402 = vpow.pop %v401
        %v403 = vsel %vm377, %v402, 0.0
        %404 = vadd.xlane.f32.xlu0 %v403
        %v405 = vpop.xlane.xlu0 %404
        %v406 = vrcp.pop %v405
        %v407 = vmul.f32 %v402, %v406
        %v408 = vpack.c.bf16 %v407, %v407
        %409 = vrot.lane.b32.xlu0 %v374, 64
        %v410 = vpop.permute.xlu0 %409
        %v412 = vsel %vm377, %v408, 0
        %vm414 = vcmask 1043456
        %v416 = vsel %vm414, %v410, 0
        %418 = vmatpush.bf16.msra.mxu0 0
        %419 = vmatpush.bf16.msra.mxu0 0
        %420 = vmatpush.bf16.msra.mxu0 0
        %421 = vmatpush.bf16.msra.mxu0 0
        %422 = vmatpush.bf16.msra.mxu0 0
        %423 = vmatpush.bf16.msra.mxu0 0
        %424 = vmatpush.bf16.msra.mxu0 0
        %425 = vmatpush.bf16.msra.mxu0 %v416
        %426 = vmatmul.bf16.gmra.mxu0 %v412
        %v427 = vpop.f32.mrf.mxu0
        %v428 = vadd.f32 0.0, %v427
        %v429 = vpop.f32.mrf.mxu0
        %430 = vdwg.mxu0
        %v431 = vpack.c.bf16 %v428, %v428
        %v433 = vunpack.c.l.b16 %v366
        %v434 = vpack.c.b16 %v433, %v433
        %435 = vrot.lane.b32.xlu0 %v434, 120
        %v436 = vpop.permute.xlu0 %435
        %437 = vrot.lane.b32.xlu0 %v374, 88
        %v438 = vpop.permute.xlu0 %437
        %v440 = vsel %vm377, %v436, 0
        %v443 = vsel %vm377, %v438, 0
        %445 = vmatpush.bf16.xpose.msra.mxu0 0
        %446 = vmatpush.bf16.xpose.msra.mxu0 0
        %447 = vmatpush.bf16.xpose.msra.mxu0 0
        %448 = vmatpush.bf16.xpose.msra.mxu0 0
        %449 = vmatpush.bf16.xpose.msra.mxu0 0
        %450 = vmatpush.bf16.xpose.msra.mxu0 0
        %451 = vmatpush.bf16.xpose.msra.mxu0 0
        %452 = vmatpush.bf16.xpose.msra.mxu0 %v443
        %453 = vmatmul.bf16.gmra.mxu0 %v440
        %v454 = vpop.f32.mrf.mxu0
        %v455 = vadd.f32 0.0, %v454
        %v456 = vpop.f32.mrf.mxu0
        %457 = vdwg.mxu0
        %v458 = vsel %vm377, %v455, -inf
        %459 = vmax.xlane.f32.xlu0 %v458
        %v460 = vpop.xlane.xlu0 %459
        %v461 = vsub.f32 %v455, %v460
        %v462 = vmul.f32 %v461, 1.442695
        %v463 = vpow.pop %v462
        %v464 = vsel %vm377, %v463, 0.0
        %465 = vadd.xlane.f32.xlu0 %v464
        %v466 = vpop.xlane.xlu0 %465
        %v467 = vrcp.pop %v466
        %v468 = vmul.f32 %v463, %v467
        %v469 = vpack.c.bf16 %v468, %v468
        %470 = vrot.lane.b32.xlu0 %v374, 56
        %v471 = vpop.permute.xlu0 %470
        %v473 = vsel %vm377, %v469, 0
        %v476 = vsel %vm414, %v471, 0
        %478 = vmatpush.bf16.msra.mxu0 0
        %479 = vmatpush.bf16.msra.mxu0 0
        %480 = vmatpush.bf16.msra.mxu0 0
        %481 = vmatpush.bf16.msra.mxu0 0
        %482 = vmatpush.bf16.msra.mxu0 0
        %483 = vmatpush.bf16.msra.mxu0 0
        %484 = vmatpush.bf16.msra.mxu0 0
        %485 = vmatpush.bf16.msra.mxu0 %v476
        %486 = vmatmul.bf16.gmra.mxu0 %v473
        %v487 = vpop.f32.mrf.mxu0
        %v488 = vadd.f32 0.0, %v487
        %v489 = vpop.f32.mrf.mxu0
        %490 = vdwg.mxu0
        %v491 = vpack.c.bf16 %v488, %v488
        %v493 = vsel %vm377, %v491, 0
        %v496 = vsel %vm414, %v369, 0
        %498 = vmatpush.bf16.msra.mxu0 0
        %499 = vmatpush.bf16.msra.mxu0 0
        %500 = vmatpush.bf16.msra.mxu0 0
        %501 = vmatpush.bf16.msra.mxu0 0
        %502 = vmatpush.bf16.msra.mxu0 0
        %503 = vmatpush.bf16.msra.mxu0 0
        %504 = vmatpush.bf16.msra.mxu0 0
        %505 = vmatpush.bf16.msra.mxu0 %v496
        %506 = vmatmul.bf16.gmra.mxu0 %v493
        %v507 = vpop.f32.mrf.mxu0
        %v508 = vadd.f32 0.0, %v507
        %v509 = vpop.f32.mrf.mxu0
        %510 = vdwg.mxu0
        %v512 = vsel %vm377, %v431, 0
        %v515 = vsel %vm414, %v368, 0
        %517 = vmatpush.bf16.msra.mxu0 0
        %518 = vmatpush.bf16.msra.mxu0 0
        %519 = vmatpush.bf16.msra.mxu0 0
        %520 = vmatpush.bf16.msra.mxu0 0
        %521 = vmatpush.bf16.msra.mxu0 0
        %522 = vmatpush.bf16.msra.mxu0 0
        %523 = vmatpush.bf16.msra.mxu0 0
        %524 = vmatpush.bf16.msra.mxu0 %v515
        %525 = vmatmul.bf16.gmra.mxu0 %v512
        %v526 = vpop.f32.mrf.mxu0
        %v527 = vadd.f32 %v508, %v526
        %v528 = vpop.f32.mrf.mxu0
        %529 = vdwg.mxu0
        %530 = vrot.lane.b32.xlu0 %v434, 112
        %v531 = vpop.permute.xlu0 %530
        %532 = vrot.lane.b32.xlu0 %v374, 80
        %v533 = vpop.permute.xlu0 %532
        %v535 = vsel %vm377, %v531, 0
        %v538 = vsel %vm377, %v533, 0
        %540 = vmatpush.bf16.xpose.msra.mxu0 0
        %541 = vmatpush.bf16.xpose.msra.mxu0 0
        %542 = vmatpush.bf16.xpose.msra.mxu0 0
        %543 = vmatpush.bf16.xpose.msra.mxu0 0
        %544 = vmatpush.bf16.xpose.msra.mxu0 0
        %545 = vmatpush.bf16.xpose.msra.mxu0 0
        %546 = vmatpush.bf16.xpose.msra.mxu0 0
        %547 = vmatpush.bf16.xpose.msra.mxu0 %v538
        %548 = vmatmul.bf16.gmra.mxu0 %v535
        %v549 = vpop.f32.mrf.mxu0
        %v550 = vadd.f32 0.0, %v549
        %v551 = vpop.f32.mrf.mxu0
        %552 = vdwg.mxu0
        %v553 = vsel %vm377, %v550, -inf
        %554 = vmax.xlane.f32.xlu0 %v553
        %v555 = vpop.xlane.xlu0 %554
        %v556 = vsub.f32 %v550, %v555
        %v557 = vmul.f32 %v556, 1.442695
        %v558 = vpow.pop %v557
        %v559 = vsel %vm377, %v558, 0.0
        %560 = vadd.xlane.f32.xlu0 %v559
        %v561 = vpop.xlane.xlu0 %560
        %v562 = vrcp.pop %v561
        %v563 = vmul.f32 %v558, %v562
        %v564 = vpack.c.bf16 %v563, %v563
        %565 = vrot.lane.b32.xlu0 %v374, 48
        %v566 = vpop.permute.xlu0 %565
        %v568 = vsel %vm377, %v564, 0
        %v571 = vsel %vm414, %v566, 0
        %573 = vmatpush.bf16.msra.mxu0 0
        %574 = vmatpush.bf16.msra.mxu0 0
        %575 = vmatpush.bf16.msra.mxu0 0
        %576 = vmatpush.bf16.msra.mxu0 0
        %577 = vmatpush.bf16.msra.mxu0 0
        %578 = vmatpush.bf16.msra.mxu0 0
        %579 = vmatpush.bf16.msra.mxu0 0
        %580 = vmatpush.bf16.msra.mxu0 %v571
        %581 = vmatmul.bf16.gmra.mxu0 %v568
        %v582 = vpop.f32.mrf.mxu0
        %v583 = vadd.f32 0.0, %v582
        %v584 = vpop.f32.mrf.mxu0
        %585 = vdwg.mxu0
        %v586 = vpack.c.bf16 %v583, %v583
        %v588 = vsel %vm377, %v586, 0
        %v591 = vsel %vm414, %v370, 0
        %593 = vmatpush.bf16.msra.mxu0 0
        %594 = vmatpush.bf16.msra.mxu0 0
        %595 = vmatpush.bf16.msra.mxu0 0
        %596 = vmatpush.bf16.msra.mxu0 0
        %597 = vmatpush.bf16.msra.mxu0 0
        %598 = vmatpush.bf16.msra.mxu0 0
        %599 = vmatpush.bf16.msra.mxu0 0
        %600 = vmatpush.bf16.msra.mxu0 %v591
        %601 = vmatmul.bf16.gmra.mxu0 %v588
        %v602 = vpop.f32.mrf.mxu0
        %v603 = vadd.f32 0.0, %v602
        %v604 = vpop.f32.mrf.mxu0
        %605 = vdwg.mxu0
        %v606 = vadd.f32 %v527, %v603
        %607 = vrot.lane.b32.xlu0 %v434, 104
        %v608 = vpop.permute.xlu0 %607
        %609 = vrot.lane.b32.xlu0 %v374, 72
        %v610 = vpop.permute.xlu0 %609
        %v612 = vsel %vm377, %v608, 0
        %v615 = vsel %vm377, %v610, 0
        %617 = vmatpush.bf16.xpose.msra.mxu0 0
        %618 = vmatpush.bf16.xpose.msra.mxu0 0
        %619 = vmatpush.bf16.xpose.msra.mxu0 0
        %620 = vmatpush.bf16.xpose.msra.mxu0 0
        %621 = vmatpush.bf16.xpose.msra.mxu0 0
        %622 = vmatpush.bf16.xpose.msra.mxu0 0
        %623 = vmatpush.bf16.xpose.msra.mxu0 0
        %624 = vmatpush.bf16.xpose.msra.mxu0 %v615
        %625 = vmatmul.bf16.gmra.mxu0 %v612
        %v626 = vpop.f32.mrf.mxu0
        %v627 = vadd.f32 0.0, %v626
        %v628 = vpop.f32.mrf.mxu0
        %629 = vdwg.mxu0
        %v630 = vsel %vm377, %v627, -inf
        %631 = vmax.xlane.f32.xlu0 %v630
        %v632 = vpop.xlane.xlu0 %631
        %v633 = vsub.f32 %v627, %v632
        %v634 = vmul.f32 %v633, 1.442695
        %v635 = vpow.pop %v634
        %v636 = vsel %vm377, %v635, 0.0
        %637 = vadd.xlane.f32.xlu0 %v636
        %v638 = vpop.xlane.xlu0 %637
        %v639 = vrcp.pop %v638
        %v640 = vmul.f32 %v635, %v639
        %v641 = vpack.c.bf16 %v640, %v640
        %642 = vrot.lane.b32.xlu0 %v374, 40
        %v643 = vpop.permute.xlu0 %642
        %v645 = vsel %vm377, %v641, 0
        %v648 = vsel %vm414, %v643, 0
        %650 = vmatpush.bf16.msra.mxu0 0
        %651 = vmatpush.bf16.msra.mxu0 0
        %652 = vmatpush.bf16.msra.mxu0 0
        %653 = vmatpush.bf16.msra.mxu0 0
        %654 = vmatpush.bf16.msra.mxu0 0
        %655 = vmatpush.bf16.msra.mxu0 0
        %656 = vmatpush.bf16.msra.mxu0 0
        %657 = vmatpush.bf16.msra.mxu0 %v648
        %658 = vmatmul.bf16.gmra.mxu0 %v645
        %v659 = vpop.f32.mrf.mxu0
        %v660 = vadd.f32 0.0, %v659
        %v661 = vpop.f32.mrf.mxu0
        %662 = vdwg.mxu0
        %v663 = vpack.c.bf16 %v660, %v660
        %v665 = vsel %vm377, %v663, 0
        %v668 = vsel %vm414, %v371, 0
        %670 = vmatpush.bf16.msra.mxu0 0
        %671 = vmatpush.bf16.msra.mxu0 0
        %672 = vmatpush.bf16.msra.mxu0 0
        %673 = vmatpush.bf16.msra.mxu0 0
        %674 = vmatpush.bf16.msra.mxu0 0
        %675 = vmatpush.bf16.msra.mxu0 0
        %676 = vmatpush.bf16.msra.mxu0 0
        %677 = vmatpush.bf16.msra.mxu0 %v668
        %678 = vmatmul.bf16.gmra.mxu0 %v665
        %v679 = vpop.f32.mrf.mxu0
        %v680 = vadd.f32 0.0, %v679
        %v681 = vpop.f32.mrf.mxu0
        %682 = vdwg.mxu0
        %v683 = vadd.f32 %v606, %v680
        %684 = vst.msk [vmem:[%s289] sm:$0xff] %vm292, %v683
        %s685 = sand.u32 %s142, 1
        %s686 = scalar_lea.sflag [#allocation4], %s685
        %s687 = sand.u32 %s142, 1
        %s688 = smul.addr %s687, 8
        %s689 = scalar_lea.vmem [#allocation10], %s688
        // Predicated region
        $region57: #{tpu_custom_call.1} parent=39 // pred_check
          %p690 = pneg %p152
        $region58: #{tpu_custom_call.1} parent=39 // pred_check_branch
          %692 = sbr.rel (%p690) target = $region60
        $region59: #{tpu_custom_call.1} parent=39 // pred_region
          %694 = vsyncadd %s686, 0
          %s695 = smul.addr %s24, 8
          %s696 = scalar_lea.hbm %s5, %s695
          %s698 = sshll.u32 %s689, 4
          %s699 = int_to_ptr.vmem [resolvable:$true] %s698
          %s700 = sshll.u32 %s696, 4
          %s701 = int_to_ptr.hbm [resolvable:$true] %s700
          %703 = dma.vmem_to_hbm [thread:$0]  %s699, 128, %s701, %s686
        $region60: #{tpu_custom_call.1} parent=39 // pred_fallthru
          _
      $region40: #{tpu_custom_call.1} parent=5 // pred_fallthru
        _
      %p704 = scmp.le.s32.totalorder 2, %s19
      // Predicated region
      $region61: #{tpu_custom_call.1} parent=5 // pred_check
        %p705 = pneg %p704
      $region62: #{tpu_custom_call.1} parent=5 // pred_check_branch
        %707 = sbr.rel (%p705) target = $region64
      $region63: #{tpu_custom_call.1} parent=5 // pred_region
        %s708 = ssub.s32 %s19, 2
        // Predicated region
        $region65: #{tpu_custom_call.1} parent=63 // pred_check
          %p709 = pneg %p158
        $region66: #{tpu_custom_call.1} parent=63 // pred_check_branch
          %711 = sbr.rel (%p709) target = $region68
        $region67: #{tpu_custom_call.1} parent=63 // pred_region
          %s712 = sand.u32 %s143, 1
          %s713 = scalar_lea.sflag [#allocation4], %s712
          %s714 = sand.u32 %s143, 1
          %s715 = smul.addr %s714, 8
          %s716 = scalar_lea.vmem [#allocation10], %s715
          %718 = dma.done %s713, 128
        $region68: #{tpu_custom_call.1} parent=63 // pred_fallthru
          _
      $region64: #{tpu_custom_call.1} parent=5 // pred_fallthru
        _
    $region6: #{tpu_custom_call.1} parent=1 // loop_footer
      %s23 = sadd.s32 1, %s19
    $region7: #{tpu_custom_call.1} parent=1 // loop_footer_branch
      %18 = sbr.rel target = $region3
    $region8: #{tpu_custom_call.1} parent=1 // loop_exit
      _
    %719 = vsyncpa [#allocation3], 1
    %s720 = scalar_lea.sflag [#allocation3], 1
    %721 = vsyncpa %s720, 1
    %722 = vsyncpa [#allocation6], 1
    %723 = vsyncpa [#allocation9], 1
    %724 = vsyncpa [#allocation4], 1
    %s725 = scalar_lea.sflag [#allocation4], 1
    %726 = vsyncpa %s725, 1

</llo_original>
